<compile_context>
chip_gen: v7x
topology: tpu7x:2x2x1
jax: 0.10.0
libtpu: 0.0.40
codegen_flags: <defaults>
</compile_context>

<pallas_src>
import functools
import math

import jax
import jax.numpy as jnp
from jax import lax
from jax.experimental import pallas as pl
from jax.experimental.pallas import tpu as pltpu


def _conv_same_replicate_acc(v, w_ref, b, K, L):
    """'same' 1D conv with replicate padding as K accumulating MXU matmuls.

    v:     (C_in, W) activation slab; lane j encodes (sample, position), W % L == 0.
    w_ref: (K, C_out, C_in) weight ref (small, VMEM-resident across all lane tiles).
    b:     (C_out, 1) float32 bias.
    Returns (C_out, W) float32 accumulator.
    """
    pad = (K - 1) // 2
    # Position-within-sample for every lane; clamps shifts at sample edges so the
    # circular wrap of the roll never leaks across samples (W is a multiple of L).
    col = lax.broadcasted_iota(jnp.int32, v.shape, 1) % L
    acc = jnp.dot(w_ref[pad], v, preferred_element_type=jnp.float32)
    left = v
    right = v
    for m in range(1, pad + 1):
        # tap offset -m: value at position l is v[max(l-m, 0)]  (left replicate edge)
        left = jnp.where(col == 0, left, jnp.roll(left, 1, axis=1))
        acc = acc + jnp.dot(w_ref[pad - m], left, preferred_element_type=jnp.float32)
        # tap offset +m: value at position l is v[min(l+m, L-1)] (right replicate edge)
        right = jnp.where(col == L - 1, right, jnp.roll(right, -1, axis=1))
        acc = acc + jnp.dot(w_ref[pad + m], right, preferred_element_type=jnp.float32)
    return acc + b


def _double_conv_kernel(x_ref, w1_ref, b1_ref, w2_ref, b2_ref, o_ref, *,
                        negative_slope, L, K1, K2):
    # x_ref:  (in_c, TILE) streamed activation tile (lane = flattened batch*length)
    # w1_ref: (K1, hid_c, in_c), b1_ref: (hid_c, 1) f32
    # w2_ref: (K2, out_c, hid_c), b2_ref: (out_c, 1) f32
    # o_ref:  (out_c, TILE)
    x = x_ref[...]

    # conv1 (+ bias), f32 accumulation
    h = _conv_same_replicate_acc(x, w1_ref, b1_ref[...], K1, L)
    # LeakyReLU in f32 (VPU)
    h = jnp.where(h >= 0, h, h * negative_slope)
    # TODO(synk): training-mode dropout (pltpu.prng_* mask + 1/(1-p) scale) not implemented; eval-mode identity.

    # conv2 (+ bias) and Tanh; matmul operands in the streaming dtype, f32 accumulation
    h = h.astype(w2_ref.dtype)
    y = _conv_same_replicate_acc(h, w2_ref, b2_ref[...], K2, L)
    o_ref[...] = jnp.tanh(y).astype(o_ref.dtype)


def _pick_lane_tile(NL, L, max_lanes):
    """Largest lane tile that is a multiple of both L (whole samples) and 128
    (lane-dense), divides N*L, and is <= max_lanes.  Falls back to the full N*L."""
    if NL <= max_lanes:
        return NL
    base = L * 128 // math.gcd(L, 128)  # lcm(L, 128)
    best = None
    t = base
    while t <= min(NL, max_lanes):
        if NL % t == 0:
            best = t
        t += base
    return best if best is not None else NL


def one_dim_double_conv(x, w1, b1, w2, b2, *, negative_slope=0.01,
                        stream_dtype=jnp.float32, max_lane_tile=None):
    """x: (N, in_c, L); w1: (hid_c, in_c, K1); w2: (out_c, hid_c, K2)."""
    N, in_c, L = x.shape
    hid_c, _, K1 = w1.shape
    out_c, w2_in, K2 = w2.shape
    assert w2_in == hid_c
    assert K1 % 2 == 1 and K2 % 2 == 1, "only odd kernel sizes ('same' replicate pad)"
    NL = N * L

    itemsize = jnp.dtype(stream_dtype).itemsize
    if max_lane_tile is None:
        # Conservative activation-stream VMEM budget (v7x: 64 MiB physical / 32 MiB
        # default scoped; v5e default scoped is 16 MiB).  Double-buffered in + out.
        budget = 8 * 1024 * 1024
        per_lane = 2 * (in_c + out_c) * itemsize + 8
        max_lane_tile = max(128, min(32768, (budget // per_lane) // 128 * 128))
    tile = _pick_lane_tile(NL, L, max_lane_tile)
    grid = (NL // tile,)

    # Channel-major lane-dense slab (in_c, N*L): just a small transpose of the raw
    # input -- no K1x im2col inflation in HBM.
    xs = jnp.transpose(x, (1, 0, 2)).reshape(in_c, NL).astype(stream_dtype)

    # Weights as (K, C_out, C_in) so the kernel indexes whole taps w_ref[k].
    w1t = jnp.transpose(w1, (2, 0, 1)).astype(stream_dtype)   # (K1, hid_c, in_c)
    w2t = jnp.transpose(w2, (2, 0, 1)).astype(stream_dtype)   # (K2, out_c, hid_c)
    b1c = b1.reshape(hid_c, 1).astype(jnp.float32)
    b2c = b2.reshape(out_c, 1).astype(jnp.float32)

    kernel = functools.partial(_double_conv_kernel, negative_slope=negative_slope,
                               L=L, K1=K1, K2=K2)

    flops = 2 * NL * (K1 * in_c * hid_c + K2 * hid_c * out_c)
    bytes_accessed = ((xs.size + w1t.size + w2t.size + out_c * NL) * itemsize
                      + (b1c.size + b2c.size) * 4)
    cost = pl.CostEstimate(flops=int(flops), transcendentals=int(out_c * NL),
                           bytes_accessed=int(bytes_accessed))

    # Explicit VMEM limit sized to the chosen tile (double-buffered in/out + weights).
    act_bytes = 2 * (in_c + out_c) * tile * itemsize
    w_bytes = (w1t.size + w2t.size) * itemsize + (b1c.size + b2c.size) * 4
    vmem_limit_bytes = int(min(32 * 1024 * 1024,
                               max(16 * 1024 * 1024, 4 * (act_bytes + w_bytes))))

    out = pl.pallas_call(
        kernel,
        out_shape=jax.ShapeDtypeStruct((out_c, NL), stream_dtype),
        grid=grid,
        in_specs=[
            pl.BlockSpec((in_c, tile), lambda i: (0, i)),          # streamed lane tiles
            pl.BlockSpec((K1, hid_c, in_c), lambda i: (0, 0, 0)),  # weights: DMA once,
            pl.BlockSpec((hid_c, 1), lambda i: (0, 0)),            # VMEM-resident
            pl.BlockSpec((K2, out_c, hid_c), lambda i: (0, 0, 0)),
            pl.BlockSpec((out_c, 1), lambda i: (0, 0)),
        ],
        out_specs=pl.BlockSpec((out_c, tile), lambda i: (0, i)),
        compiler_params=pltpu.CompilerParams(
            dimension_semantics=("parallel",),  # independent lane tiles (2 TCs on v7x)
            vmem_limit_bytes=vmem_limit_bytes),
        cost_estimate=cost,
    )(xs, w1t, b1c, w2t, b2c)

    # (out_c, N*L) -> (N, out_c, L).  Done wrapper-side so the kernel output stays
    # lane-dense (last dim = lane tile), per the lane-density guidance.
    return jnp.transpose(out.reshape(out_c, N, L), (1, 0, 2)).astype(x.dtype)


def _ref_forward(x, w1, b1, w2, b2, negative_slope=0.01):
    """Pure-JAX reference of the PyTorch module (eval mode)."""
    dn = ("NCH", "OIH", "NCH")
    pad1 = (w1.shape[-1] - 1) // 2
    xp = jnp.pad(x, ((0, 0), (0, 0), (pad1, pad1)), mode="edge")
    h = lax.conv_general_dilated(xp, w1, (1,), "VALID", dimension_numbers=dn)
    h = h + b1[None, :, None]
    h = jnp.where(h >= 0, h, negative_slope * h)
    pad2 = (w2.shape[-1] - 1) // 2
    hp = jnp.pad(h, ((0, 0), (0, 0), (pad2, pad2)), mode="edge")
    y = lax.conv_general_dilated(hp, w2, (1,), "VALID", dimension_numbers=dn)
    y = y + b2[None, :, None]
    return jnp.tanh(y)


if __name__ == "__main__":
    # module config: in_c=4, hid_c=8, out_c=4, kernel_size=5 (second conv k=3)
    N, IN_C, HID_C, OUT_C, L = 2, 4, 8, 4, 16
    K1, K2 = 5, 3

    key = jax.random.PRNGKey(0)
    kx, kw1, kb1, kw2, kb2, kx2 = jax.random.split(key, 6)

    x = jax.random.normal(kx, (N, IN_C, L), dtype=jnp.float32)
    w1 = jax.random.normal(kw1, (HID_C, IN_C, K1), dtype=jnp.float32) * 0.2
    b1 = jax.random.normal(kb1, (HID_C,), dtype=jnp.float32) * 0.1
    w2 = jax.random.normal(kw2, (OUT_C, HID_C, K2), dtype=jnp.float32) * 0.2
    b2 = jax.random.normal(kb2, (OUT_C,), dtype=jnp.float32) * 0.1

    ref = _ref_forward(x, w1, b1, w2, b2)

    # f32 streaming (N*L = 32 -> single lane tile).  Tolerance covers TPU
    # default-precision MXU passes in the XLA reference; interpret-mode error ~1e-6.
    out = jax.block_until_ready(one_dim_double_conv(x, w1, b1, w2, b2))
    assert out.shape == (N, OUT_C, L)
    assert jnp.allclose(out, ref, atol=2e-2, rtol=2e-2), "f32 mismatch vs JAX reference"

    # Multi-tile grid path: N*L = 2048, lane tile 512 (= 2 samples of L=256) -> grid=(4,).
    N2, L2 = 8, 256
    xb = jax.random.normal(kx2, (N2, IN_C, L2), dtype=jnp.float32)
    out_b = jax.block_until_ready(
        one_dim_double_conv(xb, w1, b1, w2, b2, max_lane_tile=512))
    ref_b = _ref_forward(xb, w1, b1, w2, b2)
    assert out_b.shape == (N2, OUT_C, L2)
    assert jnp.allclose(out_b, ref_b, atol=2e-2, rtol=2e-2), "tiled mismatch vs JAX reference"

    # bf16 streaming (halves HBM traffic; f32 accumulation + f32 epilogue in-kernel).
    out_bf = jax.block_until_ready(
        one_dim_double_conv(x, w1, b1, w2, b2, stream_dtype=jnp.bfloat16))
    assert jnp.allclose(out_bf, ref, atol=7e-2, rtol=7e-2), "bf16 mismatch vs JAX reference"

    print("KERNEL_OK")
</pallas_src>

<mosaic_0001>
module attributes {stable_mosaic.version = 11 : i64} {
  func.func @_double_conv_kernel(%arg0: i32, %arg1: memref<4x32xf32, #tpu.memory_space<vmem>>, %arg2: memref<5x8x4xf32, #tpu.memory_space<vmem>>, %arg3: memref<8x1xf32, #tpu.memory_space<vmem>>, %arg4: memref<3x4x8xf32, #tpu.memory_space<vmem>>, %arg5: memref<4x1xf32, #tpu.memory_space<vmem>>, %arg6: memref<4x32xf32, #tpu.memory_space<vmem>>) attributes {dimension_semantics = [#tpu.dimension_semantics<parallel>], iteration_bounds = array<i64: 1>, scalar_prefetch = 0 : i64, scratch_operands = 0 : i64, tpu.core_type = #tpu.core_type<tc>, window_params = [{transform_indices = @transform_0, window_bounds = array<i64: 4, 32>}, {pipeline_mode = #tpu.pipeline_mode<synchronous>, transform_indices = @transform_1, window_bounds = array<i64: 5, 8, 4>}, {pipeline_mode = #tpu.pipeline_mode<synchronous>, transform_indices = @transform_2, window_bounds = array<i64: 8, 1>}, {pipeline_mode = #tpu.pipeline_mode<synchronous>, transform_indices = @transform_3, window_bounds = array<i64: 3, 4, 8>}, {pipeline_mode = #tpu.pipeline_mode<synchronous>, transform_indices = @transform_4, window_bounds = array<i64: 4, 1>}, {transform_indices = @transform_5, window_bounds = array<i64: 4, 32>}]} {
    %c0 = arith.constant 0 : index
    %c0_0 = arith.constant 0 : index
    %0 = vector.load %arg1[%c0, %c0_0] : memref<4x32xf32, #tpu.memory_space<vmem>>, vector<4x32xf32>
    %c0_1 = arith.constant 0 : index
    %c0_2 = arith.constant 0 : index
    %1 = vector.load %arg3[%c0_1, %c0_2] : memref<8x1xf32, #tpu.memory_space<vmem>>, vector<8x1xf32>
    %2 = tpu.iota {dimensions = array<i32: 1>} : vector<4x32xi32>
    %c16_i32 = arith.constant 16 : i32
    %c0_i32 = arith.constant 0 : i32
    %3 = arith.cmpi eq, %c16_i32, %c0_i32 : i32
    %c1_i32 = arith.constant 1 : i32
    %4 = arith.select %3, %c1_i32, %c16_i32 : i32
    %5 = vector.broadcast %4 : i32 to vector<4x32xi32>
    %6 = arith.remsi %2, %5 : vector<4x32xi32>
    %c0_i32_3 = arith.constant 0 : i32
    %7 = vector.broadcast %c0_i32_3 : i32 to vector<4x32xi32>
    %8 = arith.cmpi ne, %6, %7 : vector<4x32xi32>
    %c0_i32_4 = arith.constant 0 : i32
    %9 = vector.broadcast %c0_i32_4 : i32 to vector<4x32xi32>
    %10 = arith.cmpi slt, %6, %9 : vector<4x32xi32>
    %c0_i32_5 = arith.constant 0 : i32
    %11 = arith.cmpi slt, %4, %c0_i32_5 : i32
    %12 = vector.broadcast %11 : i1 to vector<4x32xi1>
    %13 = vector.broadcast %12 : vector<4x32xi1> to vector<4x32xi1>
    %14 = arith.xori %10, %13 : vector<4x32xi1>
    %15 = arith.andi %14, %8 : vector<4x32xi1>
    %16 = vector.broadcast %4 : i32 to vector<4x32xi32>
    %17 = arith.addi %6, %16 : vector<4x32xi32>
    %18 = arith.select %15, %17, %6 : vector<4x32xi1>, vector<4x32xi32>
    %c2 = arith.constant 2 : index
    %c0_6 = arith.constant 0 : index
    %c0_7 = arith.constant 0 : index
    %19 = vector.load %arg2[%c2, %c0_6, %c0_7] : memref<5x8x4xf32, #tpu.memory_space<vmem>>, vector<1x8x4xf32>
    %20 = vector.shape_cast %19 : vector<1x8x4xf32> to vector<8x4xf32>
    %cst = arith.constant dense<0.000000e+00> : vector<8x32xf32>
    %21 = tpu.matmul %20, %0, %cst {dimension_numbers = #tpu.dot_dimension_numbers<[1], [0], [0], [1], [0, 0, 1, 1], [], []>} : vector<8x4xf32>, vector<4x32xf32>, vector<8x32xf32> -> vector<8x32xf32>
    %c0_i32_8 = arith.constant 0 : i32
    %22 = vector.broadcast %c0_i32_8 : i32 to vector<4x32xi32>
    %23 = arith.cmpi eq, %18, %22 : vector<4x32xi32>
    %24 = vector.extract_strided_slice %0 {offsets = [0, 31], sizes = [4, 1], strides = [1, 1]} : vector<4x32xf32> to vector<4x1xf32>
    %25 = vector.extract_strided_slice %0 {offsets = [0, 0], sizes = [4, 31], strides = [1, 1]} : vector<4x32xf32> to vector<4x31xf32>
    %26 = tpu.concatenate %24, %25 in 1 : vector<4x1xf32>, vector<4x31xf32> -> vector<4x32xf32>
    %27 = arith.select %23, %0, %26 : vector<4x32xi1>, vector<4x32xf32>
    %c1 = arith.constant 1 : index
    %c0_9 = arith.constant 0 : index
    %c0_10 = arith.constant 0 : index
    %28 = vector.load %arg2[%c1, %c0_9, %c0_10] : memref<5x8x4xf32, #tpu.memory_space<vmem>>, vector<1x8x4xf32>
    %29 = vector.shape_cast %28 : vector<1x8x4xf32> to vector<8x4xf32>
    %cst_11 = arith.constant dense<0.000000e+00> : vector<8x32xf32>
    %30 = tpu.matmul %29, %27, %cst_11 {dimension_numbers = #tpu.dot_dimension_numbers<[1], [0], [0], [1], [0, 0, 1, 1], [], []>} : vector<8x4xf32>, vector<4x32xf32>, vector<8x32xf32> -> vector<8x32xf32>
    %31 = arith.addf %21, %30 : vector<8x32xf32>
    %c15_i32 = arith.constant 15 : i32
    %32 = vector.broadcast %c15_i32 : i32 to vector<4x32xi32>
    %33 = arith.cmpi eq, %18, %32 : vector<4x32xi32>
    %34 = vector.extract_strided_slice %0 {offsets = [0, 1], sizes = [4, 31], strides = [1, 1]} : vector<4x32xf32> to vector<4x31xf32>
    %35 = vector.extract_strided_slice %0 {offsets = [0, 0], sizes = [4, 1], strides = [1, 1]} : vector<4x32xf32> to vector<4x1xf32>
    %36 = tpu.concatenate %34, %35 in 1 : vector<4x31xf32>, vector<4x1xf32> -> vector<4x32xf32>
    %37 = arith.select %33, %0, %36 : vector<4x32xi1>, vector<4x32xf32>
    %c3 = arith.constant 3 : index
    %c0_12 = arith.constant 0 : index
    %c0_13 = arith.constant 0 : index
    %38 = vector.load %arg2[%c3, %c0_12, %c0_13] : memref<5x8x4xf32, #tpu.memory_space<vmem>>, vector<1x8x4xf32>
    %39 = vector.shape_cast %38 : vector<1x8x4xf32> to vector<8x4xf32>
    %cst_14 = arith.constant dense<0.000000e+00> : vector<8x32xf32>
    %40 = tpu.matmul %39, %37, %cst_14 {dimension_numbers = #tpu.dot_dimension_numbers<[1], [0], [0], [1], [0, 0, 1, 1], [], []>} : vector<8x4xf32>, vector<4x32xf32>, vector<8x32xf32> -> vector<8x32xf32>
    %41 = arith.addf %31, %40 : vector<8x32xf32>
    %c0_i32_15 = arith.constant 0 : i32
    %42 = vector.broadcast %c0_i32_15 : i32 to vector<4x32xi32>
    %43 = arith.cmpi eq, %18, %42 : vector<4x32xi32>
    %44 = vector.extract_strided_slice %27 {offsets = [0, 31], sizes = [4, 1], strides = [1, 1]} : vector<4x32xf32> to vector<4x1xf32>
    %45 = vector.extract_strided_slice %27 {offsets = [0, 0], sizes = [4, 31], strides = [1, 1]} : vector<4x32xf32> to vector<4x31xf32>
    %46 = tpu.concatenate %44, %45 in 1 : vector<4x1xf32>, vector<4x31xf32> -> vector<4x32xf32>
    %47 = arith.select %43, %27, %46 : vector<4x32xi1>, vector<4x32xf32>
    %c0_16 = arith.constant 0 : index
    %c0_17 = arith.constant 0 : index
    %c0_18 = arith.constant 0 : index
    %48 = vector.load %arg2[%c0_16, %c0_17, %c0_18] : memref<5x8x4xf32, #tpu.memory_space<vmem>>, vector<1x8x4xf32>
    %49 = vector.shape_cast %48 : vector<1x8x4xf32> to vector<8x4xf32>
    %cst_19 = arith.constant dense<0.000000e+00> : vector<8x32xf32>
    %50 = tpu.matmul %49, %47, %cst_19 {dimension_numbers = #tpu.dot_dimension_numbers<[1], [0], [0], [1], [0, 0, 1, 1], [], []>} : vector<8x4xf32>, vector<4x32xf32>, vector<8x32xf32> -> vector<8x32xf32>
    %51 = arith.addf %41, %50 : vector<8x32xf32>
    %c15_i32_20 = arith.constant 15 : i32
    %52 = vector.broadcast %c15_i32_20 : i32 to vector<4x32xi32>
    %53 = arith.cmpi eq, %18, %52 : vector<4x32xi32>
    %54 = vector.extract_strided_slice %37 {offsets = [0, 1], sizes = [4, 31], strides = [1, 1]} : vector<4x32xf32> to vector<4x31xf32>
    %55 = vector.extract_strided_slice %37 {offsets = [0, 0], sizes = [4, 1], strides = [1, 1]} : vector<4x32xf32> to vector<4x1xf32>
    %56 = tpu.concatenate %54, %55 in 1 : vector<4x31xf32>, vector<4x1xf32> -> vector<4x32xf32>
    %57 = arith.select %53, %37, %56 : vector<4x32xi1>, vector<4x32xf32>
    %c4 = arith.constant 4 : index
    %c0_21 = arith.constant 0 : index
    %c0_22 = arith.constant 0 : index
    %58 = vector.load %arg2[%c4, %c0_21, %c0_22] : memref<5x8x4xf32, #tpu.memory_space<vmem>>, vector<1x8x4xf32>
    %59 = vector.shape_cast %58 : vector<1x8x4xf32> to vector<8x4xf32>
    %cst_23 = arith.constant dense<0.000000e+00> : vector<8x32xf32>
    %60 = tpu.matmul %59, %57, %cst_23 {dimension_numbers = #tpu.dot_dimension_numbers<[1], [0], [0], [1], [0, 0, 1, 1], [], []>} : vector<8x4xf32>, vector<4x32xf32>, vector<8x32xf32> -> vector<8x32xf32>
    %61 = arith.addf %51, %60 : vector<8x32xf32>
    %62 = vector.broadcast %1 : vector<8x1xf32> to vector<8x32xf32>
    %63 = arith.addf %61, %62 : vector<8x32xf32>
    %cst_24 = arith.constant 0.000000e+00 : f32
    %64 = vector.broadcast %cst_24 : f32 to vector<8x32xf32>
    %65 = arith.cmpf oge, %63, %64 : vector<8x32xf32>
    %cst_25 = arith.constant 0.00999999977 : f32
    %66 = vector.broadcast %cst_25 : f32 to vector<8x32xf32>
    %67 = arith.mulf %63, %66 : vector<8x32xf32>
    %68 = arith.select %65, %63, %67 : vector<8x32xi1>, vector<8x32xf32>
    %c0_26 = arith.constant 0 : index
    %c0_27 = arith.constant 0 : index
    %69 = vector.load %arg5[%c0_26, %c0_27] : memref<4x1xf32, #tpu.memory_space<vmem>>, vector<4x1xf32>
    %70 = tpu.iota {dimensions = array<i32: 1>} : vector<8x32xi32>
    %c16_i32_28 = arith.constant 16 : i32
    %c0_i32_29 = arith.constant 0 : i32
    %71 = arith.cmpi eq, %c16_i32_28, %c0_i32_29 : i32
    %c1_i32_30 = arith.constant 1 : i32
    %72 = arith.select %71, %c1_i32_30, %c16_i32_28 : i32
    %73 = vector.broadcast %72 : i32 to vector<8x32xi32>
    %74 = arith.remsi %70, %73 : vector<8x32xi32>
    %c0_i32_31 = arith.constant 0 : i32
    %75 = vector.broadcast %c0_i32_31 : i32 to vector<8x32xi32>
    %76 = arith.cmpi ne, %74, %75 : vector<8x32xi32>
    %c0_i32_32 = arith.constant 0 : i32
    %77 = vector.broadcast %c0_i32_32 : i32 to vector<8x32xi32>
    %78 = arith.cmpi slt, %74, %77 : vector<8x32xi32>
    %c0_i32_33 = arith.constant 0 : i32
    %79 = arith.cmpi slt, %72, %c0_i32_33 : i32
    %80 = vector.broadcast %79 : i1 to vector<8x32xi1>
    %81 = vector.broadcast %80 : vector<8x32xi1> to vector<8x32xi1>
    %82 = arith.xori %78, %81 : vector<8x32xi1>
    %83 = arith.andi %82, %76 : vector<8x32xi1>
    %84 = vector.broadcast %72 : i32 to vector<8x32xi32>
    %85 = arith.addi %74, %84 : vector<8x32xi32>
    %86 = arith.select %83, %85, %74 : vector<8x32xi1>, vector<8x32xi32>
    %c1_34 = arith.constant 1 : index
    %c0_35 = arith.constant 0 : index
    %c0_36 = arith.constant 0 : index
    %87 = vector.load %arg4[%c1_34, %c0_35, %c0_36] : memref<3x4x8xf32, #tpu.memory_space<vmem>>, vector<1x4x8xf32>
    %88 = vector.shape_cast %87 : vector<1x4x8xf32> to vector<4x8xf32>
    %cst_37 = arith.constant dense<0.000000e+00> : vector<4x32xf32>
    %89 = tpu.matmul %88, %68, %cst_37 {dimension_numbers = #tpu.dot_dimension_numbers<[1], [0], [0], [1], [0, 0, 1, 1], [], []>} : vector<4x8xf32>, vector<8x32xf32>, vector<4x32xf32> -> vector<4x32xf32>
    %c0_i32_38 = arith.constant 0 : i32
    %90 = vector.broadcast %c0_i32_38 : i32 to vector<8x32xi32>
    %91 = arith.cmpi eq, %86, %90 : vector<8x32xi32>
    %92 = vector.extract_strided_slice %68 {offsets = [0, 31], sizes = [8, 1], strides = [1, 1]} : vector<8x32xf32> to vector<8x1xf32>
    %93 = vector.extract_strided_slice %68 {offsets = [0, 0], sizes = [8, 31], strides = [1, 1]} : vector<8x32xf32> to vector<8x31xf32>
    %94 = tpu.concatenate %92, %93 in 1 : vector<8x1xf32>, vector<8x31xf32> -> vector<8x32xf32>
    %95 = arith.select %91, %68, %94 : vector<8x32xi1>, vector<8x32xf32>
    %c0_39 = arith.constant 0 : index
    %c0_40 = arith.constant 0 : index
    %c0_41 = arith.constant 0 : index
    %96 = vector.load %arg4[%c0_39, %c0_40, %c0_41] : memref<3x4x8xf32, #tpu.memory_space<vmem>>, vector<1x4x8xf32>
    %97 = vector.shape_cast %96 : vector<1x4x8xf32> to vector<4x8xf32>
    %cst_42 = arith.constant dense<0.000000e+00> : vector<4x32xf32>
    %98 = tpu.matmul %97, %95, %cst_42 {dimension_numbers = #tpu.dot_dimension_numbers<[1], [0], [0], [1], [0, 0, 1, 1], [], []>} : vector<4x8xf32>, vector<8x32xf32>, vector<4x32xf32> -> vector<4x32xf32>
    %99 = arith.addf %89, %98 : vector<4x32xf32>
    %c15_i32_43 = arith.constant 15 : i32
    %100 = vector.broadcast %c15_i32_43 : i32 to vector<8x32xi32>
    %101 = arith.cmpi eq, %86, %100 : vector<8x32xi32>
    %102 = vector.extract_strided_slice %68 {offsets = [0, 1], sizes = [8, 31], strides = [1, 1]} : vector<8x32xf32> to vector<8x31xf32>
    %103 = vector.extract_strided_slice %68 {offsets = [0, 0], sizes = [8, 1], strides = [1, 1]} : vector<8x32xf32> to vector<8x1xf32>
    %104 = tpu.concatenate %102, %103 in 1 : vector<8x31xf32>, vector<8x1xf32> -> vector<8x32xf32>
    %105 = arith.select %101, %68, %104 : vector<8x32xi1>, vector<8x32xf32>
    %c2_44 = arith.constant 2 : index
    %c0_45 = arith.constant 0 : index
    %c0_46 = arith.constant 0 : index
    %106 = vector.load %arg4[%c2_44, %c0_45, %c0_46] : memref<3x4x8xf32, #tpu.memory_space<vmem>>, vector<1x4x8xf32>
    %107 = vector.shape_cast %106 : vector<1x4x8xf32> to vector<4x8xf32>
    %cst_47 = arith.constant dense<0.000000e+00> : vector<4x32xf32>
    %108 = tpu.matmul %107, %105, %cst_47 {dimension_numbers = #tpu.dot_dimension_numbers<[1], [0], [0], [1], [0, 0, 1, 1], [], []>} : vector<4x8xf32>, vector<8x32xf32>, vector<4x32xf32> -> vector<4x32xf32>
    %109 = arith.addf %99, %108 : vector<4x32xf32>
    %110 = vector.broadcast %69 : vector<4x1xf32> to vector<4x32xf32>
    %111 = arith.addf %109, %110 : vector<4x32xf32>
    %112 = math.tanh %111 : vector<4x32xf32>
    %c0_48 = arith.constant 0 : index
    %c0_49 = arith.constant 0 : index
    %113 = vector.load %arg6[%c0_48, %c0_49] : memref<4x32xf32, #tpu.memory_space<vmem>>, vector<4x32xf32>
    tpu.vector_store %arg6[%c0_48, %c0_49], %112 {strides = array<i32>} : memref<4x32xf32, #tpu.memory_space<vmem>>, vector<4x32xf32>,
    return
  }
  func.func @transform_0(%arg0: i32) -> (i32, i32) {
    %c0_i32 = arith.constant 0 : i32
    %c0_i32_0 = arith.constant 0 : i32
    return %c0_i32, %arg0 : i32, i32
  }
  func.func @transform_1(%arg0: i32) -> (i32, i32, i32) {
    %c0_i32 = arith.constant 0 : i32
    %c0_i32_0 = arith.constant 0 : i32
    %c0_i32_1 = arith.constant 0 : i32
    %c0_i32_2 = arith.constant 0 : i32
    return %c0_i32, %c0_i32_0, %c0_i32_1 : i32, i32, i32
  }
  func.func @transform_2(%arg0: i32) -> (i32, i32) {
    %c0_i32 = arith.constant 0 : i32
    %c0_i32_0 = arith.constant 0 : i32
    %c0_i32_1 = arith.constant 0 : i32
    return %c0_i32, %c0_i32_0 : i32, i32
  }
  func.func @transform_3(%arg0: i32) -> (i32, i32, i32) {
    %c0_i32 = arith.constant 0 : i32
    %c0_i32_0 = arith.constant 0 : i32
    %c0_i32_1 = arith.constant 0 : i32
    %c0_i32_2 = arith.constant 0 : i32
    return %c0_i32, %c0_i32_0, %c0_i32_1 : i32, i32, i32
  }
  func.func @transform_4(%arg0: i32) -> (i32, i32) {
    %c0_i32 = arith.constant 0 : i32
    %c0_i32_0 = arith.constant 0 : i32
    %c0_i32_1 = arith.constant 0 : i32
    return %c0_i32, %c0_i32_0 : i32, i32
  }
  func.func @transform_5(%arg0: i32) -> (i32, i32) {
    %c0_i32 = arith.constant 0 : i32
    %c0_i32_0 = arith.constant 0 : i32
    return %c0_i32, %arg0 : i32, i32
  }
}

</mosaic_0001>

<llo_original>
// kernel: tpu_custom_call.1
$region0: #{tpu_custom_call.1}
  #allocation0 [shape = 'u32[]', space=smem, size = 0x4, offset = 0x4, fixed_abs, tag = 'smem constant byte address 0x4 - core index']
  #allocation1 [shape = 'u32[144,128]{1,0:T(1,128)}', space=vmem, size = 0x12000, scoped, tag = 'internal scratch']
  %s0 = inlined_call_operand.vmem [shape: f32[4,32], index: 0, kind: input, shape index: {}]
  %s1 = inlined_call_operand.vmem [shape: f32[5,8,4], index: 1, kind: input, shape index: {}]
  %s2 = inlined_call_operand.vmem [shape: f32[8,1], index: 2, kind: input, shape index: {}]
  %s3 = inlined_call_operand.vmem [shape: f32[3,4,8], index: 3, kind: input, shape index: {}]
  %s4 = inlined_call_operand.vmem [shape: f32[4,1], index: 4, kind: input, shape index: {}]
  %s5 = inlined_call_operand.hbm [shape: f32[4,32], index: 5, kind: output, shape index: {}]
  %s6 = sld [smem:[#allocation0]]
  $region30: #{tpu_custom_call.1} parent=0
    _
  %s8 = ssub.s32 1, %s6
  %s9 = scalar_select 0, %s8, %s6
  $region1: #{tpu_custom_call.1} parent=0
    #allocation2 [shape = 'u8[2048]{0}', space=vmem, size = 0x800, scoped, tag = 'output window, operand 0, single buffered']
    #allocation3 [shape = 's32[1]{0}', space=sflag, size = 0x4, scoped, tag = 'scoped memory for tpu_custom_call.1']
    %10 = vsyncpa [#allocation3], 0
    // Predicated region
    $region2: #{tpu_custom_call.1} parent=1 // pred_check
      _
    $region3: #{tpu_custom_call.1} parent=1 // pred_check_branch
      %12 = sbr.rel (0) target = $region5
    $region4: #{tpu_custom_call.1} parent=1 // pred_region
      _
    $region5: #{tpu_custom_call.1} parent=1 // pred_fallthru
      _
    // Predicated region
    $region6: #{tpu_custom_call.1} parent=1 // pred_check
      _
    $region7: #{tpu_custom_call.1} parent=1 // pred_check_branch
      %14 = sbr.rel (0) target = $region9
    $region8: #{tpu_custom_call.1} parent=1 // pred_region
      _
    $region9: #{tpu_custom_call.1} parent=1 // pred_fallthru
      _
    // Predicated region
    $region10: #{tpu_custom_call.1} parent=1 // pred_check
      _
    $region11: #{tpu_custom_call.1} parent=1 // pred_check_branch
      %16 = sbr.rel (0) target = $region13
    $region12: #{tpu_custom_call.1} parent=1 // pred_region
      _
    $region13: #{tpu_custom_call.1} parent=1 // pred_fallthru
      _
    // Predicated region
    $region14: #{tpu_custom_call.1} parent=1 // pred_check
      _
    $region15: #{tpu_custom_call.1} parent=1 // pred_check_branch
      %18 = sbr.rel (0) target = $region17
    $region16: #{tpu_custom_call.1} parent=1 // pred_region
      _
    $region17: #{tpu_custom_call.1} parent=1 // pred_fallthru
      _
    // Predicated region
    $region18: #{tpu_custom_call.1} parent=1 // pred_check
      _
    $region19: #{tpu_custom_call.1} parent=1 // pred_check_branch
      %20 = sbr.rel (0) target = $region21
    $region20: #{tpu_custom_call.1} parent=1 // pred_region
      _
    $region21: #{tpu_custom_call.1} parent=1 // pred_fallthru
      _
    %v21 = vld [vmem:[%s0] sm:$0xf]
    %v22 = vld [vmem:[%s2] sm:$0xff]
    %v23 = vlaneseq
    %v24 = vand.u32 %v23, 127
    %vm25 = vcmp.lt.s32.totalorder %v24, 0
    %v26 = vsub.s32 0, %v24
    %v27 = vsel %vm25, %v26, %v24
    %v28 = vshrl.u32 %v27, 4
    %v29 = vand.u32 %v27, 15
    %v30 = vsub.s32 0, %v29
    %v31 = vsel %vm25, %v30, %v29
    %vm32 = vcmp.ne.s32.totalorder %v31, 0
    %vm33 = vcmp.lt.s32.totalorder %v31, 0
    %vm34 = vmand %vm33, %vm32
    %v35 = vadd.s32 %v31, 16
    %v36 = vsel %vm34, %v35, %v31
    %s37 = scalar_lea.vmem %s1, 16
    %v38 = vld [vmem:[%s37] sm:$0xff]
    %vm39 = vcmp.eq.s32.totalorder %v36, 0
    %41 = vrot.lane.b32.xlu0 %v21, 97
    %v42 = vpop.permute.xlu0 %41
    %44 = vrot.lane.b32.xlu0 %v21, 1
    %v45 = vpop.permute.xlu0 %44
    %vm47 = vcmask 7168
    %v48 = vsel %vm47, %v42, %v45
    %v49 = vsel %vm39, %v21, %v48
    %s50 = scalar_lea.vmem %s1, 8
    %v51 = vld [vmem:[%s50] sm:$0xff]
    %vm52 = vcmask 31744
    %v54 = vsel %vm52, %v51, 0
    %vm56 = vcmask 1043456
    %v58 = vsel %vm56, %v49, 0
    %60 = vmatprep.subr.mxu0 0.0
    %61 = vmatpush1.msra.mxu0 %v58
    %62 = vmatprep.subr.mxu0 0.0
    %63 = vmatpush1.msra.mxu0 0.0
    %64 = vmatprep.subr.mxu0 0.0
    %65 = vmatpush1.msra.mxu0 0.0
    %66 = vmatprep.subr.mxu0 0.0
    %67 = vmatpush1.msra.mxu0 0.0
    %68 = vmatprep.subr.mxu0 0.0
    %69 = vmatpush1.msra.mxu0 0.0
    %70 = vmatprep.subr.mxu0 0.0
    %71 = vmatpush1.msra.mxu0 0.0
    %72 = vmatprep.subr.mxu0 0.0
    %73 = vmatpush1.msra.mxu0 0.0
    %74 = vmatprep.subr.mxu0 0.0
    %75 = vmatpush1.msra.mxu0 0.0
    %76 = vmatprep.subr.mxu0 0.0
    %77 = vmatpush1.msra.mxu0 0.0
    %78 = vmatprep.subr.mxu0 0.0
    %79 = vmatpush1.msra.mxu0 0.0
    %80 = vmatprep.subr.mxu0 0.0
    %81 = vmatpush1.msra.mxu0 0.0
    %82 = vmatprep.subr.mxu0 0.0
    %83 = vmatpush1.msra.mxu0 0.0
    %84 = vmatprep.subr.mxu0 0.0
    %85 = vmatpush1.msra.mxu0 0.0
    %86 = vmatprep.subr.mxu0 0.0
    %87 = vmatpush1.msra.mxu0 0.0
    %88 = vmatprep.subr.mxu0 0.0
    %89 = vmatpush1.msra.mxu0 0.0
    %90 = vmatprep.subr.mxu0 0.0
    %91 = vmatpush1.msra.mxu0 0.0
    %92 = vmatprep.subr.mxu0 0.0
    %93 = vmatpush1.msra.mxu0 0.0
    %94 = vmatprep.subr.mxu0 0.0
    %95 = vmatpush1.msra.mxu0 0.0
    %96 = vmatprep.subr.mxu0 0.0
    %97 = vmatpush1.msra.mxu0 0.0
    %98 = vmatprep.subr.mxu0 0.0
    %99 = vmatpush1.msra.mxu0 0.0
    %100 = vmatprep.subr.mxu0 0.0
    %101 = vmatpush1.msra.mxu0 0.0
    %102 = vmatprep.subr.mxu0 0.0
    %103 = vmatpush1.msra.mxu0 0.0
    %104 = vmatprep.subr.mxu0 0.0
    %105 = vmatpush1.msra.mxu0 0.0
    %106 = vmatprep.subr.mxu0 0.0
    %107 = vmatpush1.msra.mxu0 0.0
    %108 = vmatprep.subr.mxu0 0.0
    %109 = vmatpush1.msra.mxu0 0.0
    %110 = vmatprep.subr.mxu0 0.0
    %111 = vmatpush1.msra.mxu0 0.0
    %112 = vmatprep.subr.mxu0 0.0
    %113 = vmatpush1.msra.mxu0 0.0
    %114 = vmatprep.subr.mxu0 0.0
    %115 = vmatpush1.msra.mxu0 0.0
    %116 = vmatprep.subr.mxu0 0.0
    %117 = vmatpush1.msra.mxu0 0.0
    %118 = vmatprep.subr.mxu0 0.0
    %119 = vmatpush1.msra.mxu0 0.0
    %120 = vmatprep.subr.mxu0 0.0
    %121 = vmatpush1.msra.mxu0 0.0
    %122 = vmatprep.subr.mxu0 0.0
    %123 = vmatpush1.msra.mxu0 0.0
    %124 = vmatprep.mubr.f32.mxu0 0.0
    %125 = vmatmul.mubr.f32.gmra.mrb[0].mxu0 %v54
    %v126 = vpop.f32.mrb[0].mxu0
    %v127 = vadd.f32 0.0, %v126
    %v128 = vpop.f32.mrb[0].mxu0
    %129 = vdwg.mxu0
    %v131 = vsel %vm52, %v38, 0
    %v133 = vsel %vm56, %v21, 0
    %135 = vmatprep.subr.mxu0 0.0
    %136 = vmatpush1.msra.mxu0 %v133
    %137 = vmatprep.subr.mxu0 0.0
    %138 = vmatpush1.msra.mxu0 0.0
    %139 = vmatprep.subr.mxu0 0.0
    %140 = vmatpush1.msra.mxu0 0.0
    %141 = vmatprep.subr.mxu0 0.0
    %142 = vmatpush1.msra.mxu0 0.0
    %143 = vmatprep.subr.mxu0 0.0
    %144 = vmatpush1.msra.mxu0 0.0
    %145 = vmatprep.subr.mxu0 0.0
    %146 = vmatpush1.msra.mxu0 0.0
    %147 = vmatprep.subr.mxu0 0.0
    %148 = vmatpush1.msra.mxu0 0.0
    %149 = vmatprep.subr.mxu0 0.0
    %150 = vmatpush1.msra.mxu0 0.0
    %151 = vmatprep.subr.mxu0 0.0
    %152 = vmatpush1.msra.mxu0 0.0
    %153 = vmatprep.subr.mxu0 0.0
    %154 = vmatpush1.msra.mxu0 0.0
    %155 = vmatprep.subr.mxu0 0.0
    %156 = vmatpush1.msra.mxu0 0.0
    %157 = vmatprep.subr.mxu0 0.0
    %158 = vmatpush1.msra.mxu0 0.0
    %159 = vmatprep.subr.mxu0 0.0
    %160 = vmatpush1.msra.mxu0 0.0
    %161 = vmatprep.subr.mxu0 0.0
    %162 = vmatpush1.msra.mxu0 0.0
    %163 = vmatprep.subr.mxu0 0.0
    %164 = vmatpush1.msra.mxu0 0.0
    %165 = vmatprep.subr.mxu0 0.0
    %166 = vmatpush1.msra.mxu0 0.0
    %167 = vmatprep.subr.mxu0 0.0
    %168 = vmatpush1.msra.mxu0 0.0
    %169 = vmatprep.subr.mxu0 0.0
    %170 = vmatpush1.msra.mxu0 0.0
    %171 = vmatprep.subr.mxu0 0.0
    %172 = vmatpush1.msra.mxu0 0.0
    %173 = vmatprep.subr.mxu0 0.0
    %174 = vmatpush1.msra.mxu0 0.0
    %175 = vmatprep.subr.mxu0 0.0
    %176 = vmatpush1.msra.mxu0 0.0
    %177 = vmatprep.subr.mxu0 0.0
    %178 = vmatpush1.msra.mxu0 0.0
    %179 = vmatprep.subr.mxu0 0.0
    %180 = vmatpush1.msra.mxu0 0.0
    %181 = vmatprep.subr.mxu0 0.0
    %182 = vmatpush1.msra.mxu0 0.0
    %183 = vmatprep.subr.mxu0 0.0
    %184 = vmatpush1.msra.mxu0 0.0
    %185 = vmatprep.subr.mxu0 0.0
    %186 = vmatpush1.msra.mxu0 0.0
    %187 = vmatprep.subr.mxu0 0.0
    %188 = vmatpush1.msra.mxu0 0.0
    %189 = vmatprep.subr.mxu0 0.0
    %190 = vmatpush1.msra.mxu0 0.0
    %191 = vmatprep.subr.mxu0 0.0
    %192 = vmatpush1.msra.mxu0 0.0
    %193 = vmatprep.subr.mxu0 0.0
    %194 = vmatpush1.msra.mxu0 0.0
    %195 = vmatprep.subr.mxu0 0.0
    %196 = vmatpush1.msra.mxu0 0.0
    %197 = vmatprep.subr.mxu0 0.0
    %198 = vmatpush1.msra.mxu0 0.0
    %199 = vmatprep.mubr.f32.mxu0 0.0
    %200 = vmatmul.mubr.f32.gmra.mrb[0].mxu0 %v131
    %v201 = vpop.f32.mrb[0].mxu0
    %v202 = vadd.f32 %v127, %v201
    %v203 = vpop.f32.mrb[0].mxu0
    %204 = vdwg.mxu0
    %vm205 = vcmp.eq.s32.totalorder %v36, 15
    %206 = vrot.lane.b32.xlu0 %v21, 127
    %v207 = vpop.permute.xlu0 %206
    %209 = vrot.lane.b32.xlu0 %v21, 31
    %v210 = vpop.permute.xlu0 %209
    %vm212 = vcmask 252928
    %v213 = vsel %vm212, %v207, %v210
    %v214 = vsel %vm205, %v21, %v213
    %s215 = scalar_lea.vmem %s1, 24
    %v216 = vld [vmem:[%s215] sm:$0xff]
    %v218 = vsel %vm52, %v216, 0
    %v221 = vsel %vm56, %v214, 0
    %223 = vmatprep.subr.mxu0 0.0
    %224 = vmatpush1.msra.mxu0 %v221
    %225 = vmatprep.subr.mxu0 0.0
    %226 = vmatpush1.msra.mxu0 0.0
    %227 = vmatprep.subr.mxu0 0.0
    %228 = vmatpush1.msra.mxu0 0.0
    %229 = vmatprep.subr.mxu0 0.0
    %230 = vmatpush1.msra.mxu0 0.0
    %231 = vmatprep.subr.mxu0 0.0
    %232 = vmatpush1.msra.mxu0 0.0
    %233 = vmatprep.subr.mxu0 0.0
    %234 = vmatpush1.msra.mxu0 0.0
    %235 = vmatprep.subr.mxu0 0.0
    %236 = vmatpush1.msra.mxu0 0.0
    %237 = vmatprep.subr.mxu0 0.0
    %238 = vmatpush1.msra.mxu0 0.0
    %239 = vmatprep.subr.mxu0 0.0
    %240 = vmatpush1.msra.mxu0 0.0
    %241 = vmatprep.subr.mxu0 0.0
    %242 = vmatpush1.msra.mxu0 0.0
    %243 = vmatprep.subr.mxu0 0.0
    %244 = vmatpush1.msra.mxu0 0.0
    %245 = vmatprep.subr.mxu0 0.0
    %246 = vmatpush1.msra.mxu0 0.0
    %247 = vmatprep.subr.mxu0 0.0
    %248 = vmatpush1.msra.mxu0 0.0
    %249 = vmatprep.subr.mxu0 0.0
    %250 = vmatpush1.msra.mxu0 0.0
    %251 = vmatprep.subr.mxu0 0.0
    %252 = vmatpush1.msra.mxu0 0.0
    %253 = vmatprep.subr.mxu0 0.0
    %254 = vmatpush1.msra.mxu0 0.0
    %255 = vmatprep.subr.mxu0 0.0
    %256 = vmatpush1.msra.mxu0 0.0
    %257 = vmatprep.subr.mxu0 0.0
    %258 = vmatpush1.msra.mxu0 0.0
    %259 = vmatprep.subr.mxu0 0.0
    %260 = vmatpush1.msra.mxu0 0.0
    %261 = vmatprep.subr.mxu0 0.0
    %262 = vmatpush1.msra.mxu0 0.0
    %263 = vmatprep.subr.mxu0 0.0
    %264 = vmatpush1.msra.mxu0 0.0
    %265 = vmatprep.subr.mxu0 0.0
    %266 = vmatpush1.msra.mxu0 0.0
    %267 = vmatprep.subr.mxu0 0.0
    %268 = vmatpush1.msra.mxu0 0.0
    %269 = vmatprep.subr.mxu0 0.0
    %270 = vmatpush1.msra.mxu0 0.0
    %271 = vmatprep.subr.mxu0 0.0
    %272 = vmatpush1.msra.mxu0 0.0
    %273 = vmatprep.subr.mxu0 0.0
    %274 = vmatpush1.msra.mxu0 0.0
    %275 = vmatprep.subr.mxu0 0.0
    %276 = vmatpush1.msra.mxu0 0.0
    %277 = vmatprep.subr.mxu0 0.0
    %278 = vmatpush1.msra.mxu0 0.0
    %279 = vmatprep.subr.mxu0 0.0
    %280 = vmatpush1.msra.mxu0 0.0
    %281 = vmatprep.subr.mxu0 0.0
    %282 = vmatpush1.msra.mxu0 0.0
    %283 = vmatprep.subr.mxu0 0.0
    %284 = vmatpush1.msra.mxu0 0.0
    %285 = vmatprep.subr.mxu0 0.0
    %286 = vmatpush1.msra.mxu0 0.0
    %287 = vmatprep.mubr.f32.mxu0 0.0
    %288 = vmatmul.mubr.f32.gmra.mrb[0].mxu0 %v218
    %v289 = vpop.f32.mrb[0].mxu0
    %v290 = vadd.f32 0.0, %v289
    %v291 = vpop.f32.mrb[0].mxu0
    %292 = vdwg.mxu0
    %v293 = vadd.f32 %v202, %v290
    %294 = vrot.lane.b32.xlu0 %v49, 97
    %v295 = vpop.permute.xlu0 %294
    %297 = vrot.lane.b32.xlu0 %v49, 1
    %v298 = vpop.permute.xlu0 %297
    %v300 = vsel %vm47, %v295, %v298
    %v301 = vsel %vm39, %v21, %v300
    %v302 = vld [vmem:[%s1] sm:$0xff]
    %v304 = vsel %vm52, %v302, 0
    %v307 = vsel %vm56, %v301, 0
    %309 = vmatprep.subr.mxu0 0.0
    %310 = vmatpush1.msra.mxu0 %v307
    %311 = vmatprep.subr.mxu0 0.0
    %312 = vmatpush1.msra.mxu0 0.0
    %313 = vmatprep.subr.mxu0 0.0
    %314 = vmatpush1.msra.mxu0 0.0
    %315 = vmatprep.subr.mxu0 0.0
    %316 = vmatpush1.msra.mxu0 0.0
    %317 = vmatprep.subr.mxu0 0.0
    %318 = vmatpush1.msra.mxu0 0.0
    %319 = vmatprep.subr.mxu0 0.0
    %320 = vmatpush1.msra.mxu0 0.0
    %321 = vmatprep.subr.mxu0 0.0
    %322 = vmatpush1.msra.mxu0 0.0
    %323 = vmatprep.subr.mxu0 0.0
    %324 = vmatpush1.msra.mxu0 0.0
    %325 = vmatprep.subr.mxu0 0.0
    %326 = vmatpush1.msra.mxu0 0.0
    %327 = vmatprep.subr.mxu0 0.0
    %328 = vmatpush1.msra.mxu0 0.0
    %329 = vmatprep.subr.mxu0 0.0
    %330 = vmatpush1.msra.mxu0 0.0
    %331 = vmatprep.subr.mxu0 0.0
    %332 = vmatpush1.msra.mxu0 0.0
    %333 = vmatprep.subr.mxu0 0.0
    %334 = vmatpush1.msra.mxu0 0.0
    %335 = vmatprep.subr.mxu0 0.0
    %336 = vmatpush1.msra.mxu0 0.0
    %337 = vmatprep.subr.mxu0 0.0
    %338 = vmatpush1.msra.mxu0 0.0
    %339 = vmatprep.subr.mxu0 0.0
    %340 = vmatpush1.msra.mxu0 0.0
    %341 = vmatprep.subr.mxu0 0.0
    %342 = vmatpush1.msra.mxu0 0.0
    %343 = vmatprep.subr.mxu0 0.0
    %344 = vmatpush1.msra.mxu0 0.0
    %345 = vmatprep.subr.mxu0 0.0
    %346 = vmatpush1.msra.mxu0 0.0
    %347 = vmatprep.subr.mxu0 0.0
    %348 = vmatpush1.msra.mxu0 0.0
    %349 = vmatprep.subr.mxu0 0.0
    %350 = vmatpush1.msra.mxu0 0.0
    %351 = vmatprep.subr.mxu0 0.0
    %352 = vmatpush1.msra.mxu0 0.0
    %353 = vmatprep.subr.mxu0 0.0
    %354 = vmatpush1.msra.mxu0 0.0
    %355 = vmatprep.subr.mxu0 0.0
    %356 = vmatpush1.msra.mxu0 0.0
    %357 = vmatprep.subr.mxu0 0.0
    %358 = vmatpush1.msra.mxu0 0.0
    %359 = vmatprep.subr.mxu0 0.0
    %360 = vmatpush1.msra.mxu0 0.0
    %361 = vmatprep.subr.mxu0 0.0
    %362 = vmatpush1.msra.mxu0 0.0
    %363 = vmatprep.subr.mxu0 0.0
    %364 = vmatpush1.msra.mxu0 0.0
    %365 = vmatprep.subr.mxu0 0.0
    %366 = vmatpush1.msra.mxu0 0.0
    %367 = vmatprep.subr.mxu0 0.0
    %368 = vmatpush1.msra.mxu0 0.0
    %369 = vmatprep.subr.mxu0 0.0
    %370 = vmatpush1.msra.mxu0 0.0
    %371 = vmatprep.subr.mxu0 0.0
    %372 = vmatpush1.msra.mxu0 0.0
    %373 = vmatprep.mubr.f32.mxu0 0.0
    %374 = vmatmul.mubr.f32.gmra.mrb[0].mxu0 %v304
    %v375 = vpop.f32.mrb[0].mxu0
    %v376 = vadd.f32 0.0, %v375
    %v377 = vpop.f32.mrb[0].mxu0
    %378 = vdwg.mxu0
    %v379 = vadd.f32 %v293, %v376
    %380 = vrot.lane.b32.xlu0 %v214, 127
    %v381 = vpop.permute.xlu0 %380
    %383 = vrot.lane.b32.xlu0 %v214, 31
    %v384 = vpop.permute.xlu0 %383
    %v386 = vsel %vm212, %v381, %v384
    %v387 = vsel %vm205, %v21, %v386
    %s388 = scalar_lea.vmem %s1, 32
    %v389 = vld [vmem:[%s388] sm:$0xff]
    %v391 = vsel %vm52, %v389, 0
    %v394 = vsel %vm56, %v387, 0
    %396 = vmatprep.subr.mxu0 0.0
    %397 = vmatpush1.msra.mxu0 %v394
    %398 = vmatprep.subr.mxu0 0.0
    %399 = vmatpush1.msra.mxu0 0.0
    %400 = vmatprep.subr.mxu0 0.0
    %401 = vmatpush1.msra.mxu0 0.0
    %402 = vmatprep.subr.mxu0 0.0
    %403 = vmatpush1.msra.mxu0 0.0
    %404 = vmatprep.subr.mxu0 0.0
    %405 = vmatpush1.msra.mxu0 0.0
    %406 = vmatprep.subr.mxu0 0.0
    %407 = vmatpush1.msra.mxu0 0.0
    %408 = vmatprep.subr.mxu0 0.0
    %409 = vmatpush1.msra.mxu0 0.0
    %410 = vmatprep.subr.mxu0 0.0
    %411 = vmatpush1.msra.mxu0 0.0
    %412 = vmatprep.subr.mxu0 0.0
    %413 = vmatpush1.msra.mxu0 0.0
    %414 = vmatprep.subr.mxu0 0.0
    %415 = vmatpush1.msra.mxu0 0.0
    %416 = vmatprep.subr.mxu0 0.0
    %417 = vmatpush1.msra.mxu0 0.0
    %418 = vmatprep.subr.mxu0 0.0
    %419 = vmatpush1.msra.mxu0 0.0
    %420 = vmatprep.subr.mxu0 0.0
    %421 = vmatpush1.msra.mxu0 0.0
    %422 = vmatprep.subr.mxu0 0.0
    %423 = vmatpush1.msra.mxu0 0.0
    %424 = vmatprep.subr.mxu0 0.0
    %425 = vmatpush1.msra.mxu0 0.0
    %426 = vmatprep.subr.mxu0 0.0
    %427 = vmatpush1.msra.mxu0 0.0
    %428 = vmatprep.subr.mxu0 0.0
    %429 = vmatpush1.msra.mxu0 0.0
    %430 = vmatprep.subr.mxu0 0.0
    %431 = vmatpush1.msra.mxu0 0.0
    %432 = vmatprep.subr.mxu0 0.0
    %433 = vmatpush1.msra.mxu0 0.0
    %434 = vmatprep.subr.mxu0 0.0
    %435 = vmatpush1.msra.mxu0 0.0
    %436 = vmatprep.subr.mxu0 0.0
    %437 = vmatpush1.msra.mxu0 0.0
    %438 = vmatprep.subr.mxu0 0.0
    %439 = vmatpush1.msra.mxu0 0.0
    %440 = vmatprep.subr.mxu0 0.0
    %441 = vmatpush1.msra.mxu0 0.0
    %442 = vmatprep.subr.mxu0 0.0
    %443 = vmatpush1.msra.mxu0 0.0
    %444 = vmatprep.subr.mxu0 0.0
    %445 = vmatpush1.msra.mxu0 0.0
    %446 = vmatprep.subr.mxu0 0.0
    %447 = vmatpush1.msra.mxu0 0.0
    %448 = vmatprep.subr.mxu0 0.0
    %449 = vmatpush1.msra.mxu0 0.0
    %450 = vmatprep.subr.mxu0 0.0
    %451 = vmatpush1.msra.mxu0 0.0
    %452 = vmatprep.subr.mxu0 0.0
    %453 = vmatpush1.msra.mxu0 0.0
    %454 = vmatprep.subr.mxu0 0.0
    %455 = vmatpush1.msra.mxu0 0.0
    %456 = vmatprep.subr.mxu0 0.0
    %457 = vmatpush1.msra.mxu0 0.0
    %458 = vmatprep.subr.mxu0 0.0
    %459 = vmatpush1.msra.mxu0 0.0
    %460 = vmatprep.mubr.f32.mxu0 0.0
    %461 = vmatmul.mubr.f32.gmra.mrb[0].mxu0 %v391
    %v462 = vpop.f32.mrb[0].mxu0
    %v463 = vadd.f32 0.0, %v462
    %v464 = vpop.f32.mrb[0].mxu0
    %465 = vdwg.mxu0
    %v466 = vadd.f32 %v379, %v463
    %468 = vset.pattern.permute.xlu0 0
    %469 = vperm.xlu0 %468, %v22
    %v470 = vpop.permute.xlu0 %469
    %v472 = vadd.f32 %v466, %v470
    %vm473 = vcmp.ge.f32.partialorder %v472, 0.0
    %v474 = vmul.f32 %v472, 0.01
    %v475 = vsel %vm473, %v472, %v474
    %v476 = vld [vmem:[%s4] sm:$0xf]
    %s477 = scalar_lea.vmem %s3, 4
    %v478 = vld [vmem:[%s477] sm:$0xf]
    %480 = vrot.lane.b32.xlu0 %v475, 97
    %v481 = vpop.permute.xlu0 %480
    %483 = vrot.lane.b32.xlu0 %v475, 1
    %v484 = vpop.permute.xlu0 %483
    %v486 = vsel %vm47, %v481, %v484
    %v487 = vsel %vm39, %v475, %v486
    %v488 = vld [vmem:[%s3] sm:$0xf]
    %vm489 = vcmask 64512
    %v491 = vsel %vm489, %v488, 0
    %493 = vmatprep.subr.mxu0 0.0
    %494 = vmatpush1.msra.mxu0 %v487
    %495 = vmatprep.subr.mxu0 0.0
    %496 = vmatpush1.msra.mxu0 0.0
    %497 = vmatprep.subr.mxu0 0.0
    %498 = vmatpush1.msra.mxu0 0.0
    %499 = vmatprep.subr.mxu0 0.0
    %500 = vmatpush1.msra.mxu0 0.0
    %501 = vmatprep.subr.mxu0 0.0
    %502 = vmatpush1.msra.mxu0 0.0
    %503 = vmatprep.subr.mxu0 0.0
    %504 = vmatpush1.msra.mxu0 0.0
    %505 = vmatprep.subr.mxu0 0.0
    %506 = vmatpush1.msra.mxu0 0.0
    %507 = vmatprep.subr.mxu0 0.0
    %508 = vmatpush1.msra.mxu0 0.0
    %509 = vmatprep.subr.mxu0 0.0
    %510 = vmatpush1.msra.mxu0 0.0
    %511 = vmatprep.subr.mxu0 0.0
    %512 = vmatpush1.msra.mxu0 0.0
    %513 = vmatprep.subr.mxu0 0.0
    %514 = vmatpush1.msra.mxu0 0.0
    %515 = vmatprep.subr.mxu0 0.0
    %516 = vmatpush1.msra.mxu0 0.0
    %517 = vmatprep.subr.mxu0 0.0
    %518 = vmatpush1.msra.mxu0 0.0
    %519 = vmatprep.subr.mxu0 0.0
    %520 = vmatpush1.msra.mxu0 0.0
    %521 = vmatprep.subr.mxu0 0.0
    %522 = vmatpush1.msra.mxu0 0.0
    %523 = vmatprep.subr.mxu0 0.0
    %524 = vmatpush1.msra.mxu0 0.0
    %525 = vmatprep.subr.mxu0 0.0
    %526 = vmatpush1.msra.mxu0 0.0
    %527 = vmatprep.subr.mxu0 0.0
    %528 = vmatpush1.msra.mxu0 0.0
    %529 = vmatprep.subr.mxu0 0.0
    %530 = vmatpush1.msra.mxu0 0.0
    %531 = vmatprep.subr.mxu0 0.0
    %532 = vmatpush1.msra.mxu0 0.0
    %533 = vmatprep.subr.mxu0 0.0
    %534 = vmatpush1.msra.mxu0 0.0
    %535 = vmatprep.subr.mxu0 0.0
    %536 = vmatpush1.msra.mxu0 0.0
    %537 = vmatprep.subr.mxu0 0.0
    %538 = vmatpush1.msra.mxu0 0.0
    %539 = vmatprep.subr.mxu0 0.0
    %540 = vmatpush1.msra.mxu0 0.0
    %541 = vmatprep.subr.mxu0 0.0
    %542 = vmatpush1.msra.mxu0 0.0
    %543 = vmatprep.subr.mxu0 0.0
    %544 = vmatpush1.msra.mxu0 0.0
    %545 = vmatprep.subr.mxu0 0.0
    %546 = vmatpush1.msra.mxu0 0.0
    %547 = vmatprep.subr.mxu0 0.0
    %548 = vmatpush1.msra.mxu0 0.0
    %549 = vmatprep.subr.mxu0 0.0
    %550 = vmatpush1.msra.mxu0 0.0
    %551 = vmatprep.subr.mxu0 0.0
    %552 = vmatpush1.msra.mxu0 0.0
    %553 = vmatprep.subr.mxu0 0.0
    %554 = vmatpush1.msra.mxu0 0.0
    %555 = vmatprep.subr.mxu0 0.0
    %556 = vmatpush1.msra.mxu0 0.0
    %557 = vmatprep.mubr.f32.mxu0 0.0
    %558 = vmatmul.mubr.f32.gmra.mrb[0].mxu0 %v491
    %v559 = vpop.f32.mrb[0].mxu0
    %v560 = vadd.f32 0.0, %v559
    %v561 = vpop.f32.mrb[0].mxu0
    %562 = vdwg.mxu0
    %v564 = vsel %vm489, %v478, 0
    %566 = vmatprep.subr.mxu0 0.0
    %567 = vmatpush1.msra.mxu0 %v475
    %568 = vmatprep.subr.mxu0 0.0
    %569 = vmatpush1.msra.mxu0 0.0
    %570 = vmatprep.subr.mxu0 0.0
    %571 = vmatpush1.msra.mxu0 0.0
    %572 = vmatprep.subr.mxu0 0.0
    %573 = vmatpush1.msra.mxu0 0.0
    %574 = vmatprep.subr.mxu0 0.0
    %575 = vmatpush1.msra.mxu0 0.0
    %576 = vmatprep.subr.mxu0 0.0
    %577 = vmatpush1.msra.mxu0 0.0
    %578 = vmatprep.subr.mxu0 0.0
    %579 = vmatpush1.msra.mxu0 0.0
    %580 = vmatprep.subr.mxu0 0.0
    %581 = vmatpush1.msra.mxu0 0.0
    %582 = vmatprep.subr.mxu0 0.0
    %583 = vmatpush1.msra.mxu0 0.0
    %584 = vmatprep.subr.mxu0 0.0
    %585 = vmatpush1.msra.mxu0 0.0
    %586 = vmatprep.subr.mxu0 0.0
    %587 = vmatpush1.msra.mxu0 0.0
    %588 = vmatprep.subr.mxu0 0.0
    %589 = vmatpush1.msra.mxu0 0.0
    %590 = vmatprep.subr.mxu0 0.0
    %591 = vmatpush1.msra.mxu0 0.0
    %592 = vmatprep.subr.mxu0 0.0
    %593 = vmatpush1.msra.mxu0 0.0
    %594 = vmatprep.subr.mxu0 0.0
    %595 = vmatpush1.msra.mxu0 0.0
    %596 = vmatprep.subr.mxu0 0.0
    %597 = vmatpush1.msra.mxu0 0.0
    %598 = vmatprep.subr.mxu0 0.0
    %599 = vmatpush1.msra.mxu0 0.0
    %600 = vmatprep.subr.mxu0 0.0
    %601 = vmatpush1.msra.mxu0 0.0
    %602 = vmatprep.subr.mxu0 0.0
    %603 = vmatpush1.msra.mxu0 0.0
    %604 = vmatprep.subr.mxu0 0.0
    %605 = vmatpush1.msra.mxu0 0.0
    %606 = vmatprep.subr.mxu0 0.0
    %607 = vmatpush1.msra.mxu0 0.0
    %608 = vmatprep.subr.mxu0 0.0
    %609 = vmatpush1.msra.mxu0 0.0
    %610 = vmatprep.subr.mxu0 0.0
    %611 = vmatpush1.msra.mxu0 0.0
    %612 = vmatprep.subr.mxu0 0.0
    %613 = vmatpush1.msra.mxu0 0.0
    %614 = vmatprep.subr.mxu0 0.0
    %615 = vmatpush1.msra.mxu0 0.0
    %616 = vmatprep.subr.mxu0 0.0
    %617 = vmatpush1.msra.mxu0 0.0
    %618 = vmatprep.subr.mxu0 0.0
    %619 = vmatpush1.msra.mxu0 0.0
    %620 = vmatprep.subr.mxu0 0.0
    %621 = vmatpush1.msra.mxu0 0.0
    %622 = vmatprep.subr.mxu0 0.0
    %623 = vmatpush1.msra.mxu0 0.0
    %624 = vmatprep.subr.mxu0 0.0
    %625 = vmatpush1.msra.mxu0 0.0
    %626 = vmatprep.subr.mxu0 0.0
    %627 = vmatpush1.msra.mxu0 0.0
    %628 = vmatprep.subr.mxu0 0.0
    %629 = vmatpush1.msra.mxu0 0.0
    %630 = vmatprep.mubr.f32.mxu0 0.0
    %631 = vmatmul.mubr.f32.gmra.mrb[0].mxu0 %v564
    %v632 = vpop.f32.mrb[0].mxu0
    %v633 = vadd.f32 %v560, %v632
    %v634 = vpop.f32.mrb[0].mxu0
    %635 = vdwg.mxu0
    %636 = vrot.lane.b32.xlu0 %v475, 127
    %v637 = vpop.permute.xlu0 %636
    %639 = vrot.lane.b32.xlu0 %v475, 31
    %v640 = vpop.permute.xlu0 %639
    %v642 = vsel %vm212, %v637, %v640
    %v643 = vsel %vm205, %v475, %v642
    %s644 = scalar_lea.vmem %s3, 8
    %v645 = vld [vmem:[%s644] sm:$0xf]
    %v647 = vsel %vm489, %v645, 0
    %649 = vmatprep.subr.mxu0 0.0
    %650 = vmatpush1.msra.mxu0 %v643
    %651 = vmatprep.subr.mxu0 0.0
    %652 = vmatpush1.msra.mxu0 0.0
    %653 = vmatprep.subr.mxu0 0.0
    %654 = vmatpush1.msra.mxu0 0.0
    %655 = vmatprep.subr.mxu0 0.0
    %656 = vmatpush1.msra.mxu0 0.0
    %657 = vmatprep.subr.mxu0 0.0
    %658 = vmatpush1.msra.mxu0 0.0
    %659 = vmatprep.subr.mxu0 0.0
    %660 = vmatpush1.msra.mxu0 0.0
    %661 = vmatprep.subr.mxu0 0.0
    %662 = vmatpush1.msra.mxu0 0.0
    %663 = vmatprep.subr.mxu0 0.0
    %664 = vmatpush1.msra.mxu0 0.0
    %665 = vmatprep.subr.mxu0 0.0
    %666 = vmatpush1.msra.mxu0 0.0
    %667 = vmatprep.subr.mxu0 0.0
    %668 = vmatpush1.msra.mxu0 0.0
    %669 = vmatprep.subr.mxu0 0.0
    %670 = vmatpush1.msra.mxu0 0.0
    %671 = vmatprep.subr.mxu0 0.0
    %672 = vmatpush1.msra.mxu0 0.0
    %673 = vmatprep.subr.mxu0 0.0
    %674 = vmatpush1.msra.mxu0 0.0
    %675 = vmatprep.subr.mxu0 0.0
    %676 = vmatpush1.msra.mxu0 0.0
    %677 = vmatprep.subr.mxu0 0.0
    %678 = vmatpush1.msra.mxu0 0.0
    %679 = vmatprep.subr.mxu0 0.0
    %680 = vmatpush1.msra.mxu0 0.0
    %681 = vmatprep.subr.mxu0 0.0
    %682 = vmatpush1.msra.mxu0 0.0
    %683 = vmatprep.subr.mxu0 0.0
    %684 = vmatpush1.msra.mxu0 0.0
    %685 = vmatprep.subr.mxu0 0.0
    %686 = vmatpush1.msra.mxu0 0.0
    %687 = vmatprep.subr.mxu0 0.0
    %688 = vmatpush1.msra.mxu0 0.0
    %689 = vmatprep.subr.mxu0 0.0
    %690 = vmatpush1.msra.mxu0 0.0
    %691 = vmatprep.subr.mxu0 0.0
    %692 = vmatpush1.msra.mxu0 0.0
    %693 = vmatprep.subr.mxu0 0.0
    %694 = vmatpush1.msra.mxu0 0.0
    %695 = vmatprep.subr.mxu0 0.0
    %696 = vmatpush1.msra.mxu0 0.0
    %697 = vmatprep.subr.mxu0 0.0
    %698 = vmatpush1.msra.mxu0 0.0
    %699 = vmatprep.subr.mxu0 0.0
    %700 = vmatpush1.msra.mxu0 0.0
    %701 = vmatprep.subr.mxu0 0.0
    %702 = vmatpush1.msra.mxu0 0.0
    %703 = vmatprep.subr.mxu0 0.0
    %704 = vmatpush1.msra.mxu0 0.0
    %705 = vmatprep.subr.mxu0 0.0
    %706 = vmatpush1.msra.mxu0 0.0
    %707 = vmatprep.subr.mxu0 0.0
    %708 = vmatpush1.msra.mxu0 0.0
    %709 = vmatprep.subr.mxu0 0.0
    %710 = vmatpush1.msra.mxu0 0.0
    %711 = vmatprep.subr.mxu0 0.0
    %712 = vmatpush1.msra.mxu0 0.0
    %713 = vmatprep.mubr.f32.mxu0 0.0
    %714 = vmatmul.mubr.f32.gmra.mrb[0].mxu0 %v647
    %v715 = vpop.f32.mrb[0].mxu0
    %v716 = vadd.f32 0.0, %v715
    %v717 = vpop.f32.mrb[0].mxu0
    %718 = vdwg.mxu0
    %v719 = vadd.f32 %v633, %v716
    %721 = vset.pattern.permute.xlu0 0
    %722 = vperm.xlu0 %721, %v476
    %v723 = vpop.permute.xlu0 %722
    %v725 = vadd.f32 %v719, %v723
    %v726 = vtanh.pop %v725
    %vm727 = vcmask 257024
    %728 = vst.msk [vmem:[#allocation2] sm:$0xf] %vm727, %v726
    // Predicated region
    $region22: #{tpu_custom_call.1} parent=1 // pred_check
      _
    $region23: #{tpu_custom_call.1} parent=1 // pred_check_branch
      %730 = sbr.rel (0) target = $region25
    $region24: #{tpu_custom_call.1} parent=1 // pred_region
      %s732 = ssub.s32 64, 64
      %733 = vsyncadd [#allocation3], %s732
      %s735 = sshll.u32 [#allocation2], 4
      %s736 = int_to_ptr.vmem [resolvable:$true] %s735
      %738 = dma.vmem_to_hbm [thread:$0]  %s736, 64, %s5, [#allocation3]
    $region25: #{tpu_custom_call.1} parent=1 // pred_fallthru
      _
    // Predicated region
    $region26: #{tpu_custom_call.1} parent=1 // pred_check
      _
    $region27: #{tpu_custom_call.1} parent=1 // pred_check_branch
      %740 = sbr.rel (0) target = $region29
    $region28: #{tpu_custom_call.1} parent=1 // pred_region
      %741 = dma.done [#allocation3], 64
    $region29: #{tpu_custom_call.1} parent=1 // pred_fallthru
      _
    %742 = vsyncpa [#allocation3], 1

</llo_original>
